<compile_context>
chip_gen: v5e
topology: v5e:2x2
jax: 0.10.0
libtpu: 0.0.40
codegen_flags: <defaults>
</compile_context>

<pallas_src>
import functools

import numpy as np

import jax
import jax.numpy as jnp
from jax.experimental import pallas as pl
from jax.experimental.pallas import tpu as pltpu


# ----------------------------------------------------------------------------
# Host-side weight folding (runs once, outside jit, on tiny arrays).
# ----------------------------------------------------------------------------
def _fold_bn(p, eps=1e-5):
    """Fold eval-mode BatchNorm (and the conv bias) into scale / shift."""
    scale = np.asarray(p["gamma"]) / np.sqrt(np.asarray(p["var"]) + eps)
    shift = np.asarray(p["beta"]) + scale * (np.asarray(p["b"]) - np.asarray(p["mean"]))
    return scale.astype(np.float32), shift.astype(np.float32)


def _row_select_matrices(h_out, upsample):
    """R[kh] @ X picks, for each output row, the source row feeding conv tap kh.

    Folds the kh shift, the zero row-padding (padding=1) and, when `upsample`,
    the 2x nearest row-upsample into a 0/1 matrix of shape (h_out, h_in).
    """
    h_in = h_out // 2 if upsample else h_out
    r = np.zeros((3, h_out, h_in), np.float32)
    for kh in range(3):
        for ho in range(h_out):
            hs = ho + kh - 1                      # row on the (upsampled) grid
            if 0 <= hs < h_out:
                r[kh, ho, hs // 2 if upsample else hs] = 1.0
    return r


def _lane_band_matrices(w_hwio, w_out, upsample):
    """WB[kh]: block-banded (W_in*Cin, W_out*Cout) matrices.

    Folds the three kw taps, the zero column-padding and (when `upsample`) the
    2x nearest column-upsample of a stride-1 3x3 'same' conv into one
    lane-dense MXU contraction per kh.
    """
    w_np = np.asarray(w_hwio, np.float32)         # (3, 3, Cin, Cout)  HWIO
    cin, cout = w_np.shape[2], w_np.shape[3]
    w_in = w_out // 2 if upsample else w_out
    wb = np.zeros((3, w_in * cin, w_out * cout), np.float32)
    for kh in range(3):
        for wo in range(w_out):
            for kw in range(3):
                ws = wo + kw - 1                  # column on the (upsampled) grid
                if not (0 <= ws < w_out):
                    continue                      # zero padding
                wi = ws // 2 if upsample else ws  # stored input column
                wb[kh, wi * cin:(wi + 1) * cin, wo * cout:(wo + 1) * cout] += w_np[kh, kw]
    return wb


def prepare_kernel_params(params, h_in, w_in):
    """Build all kernel-ready folded weights for a given input spatial size."""
    c_in = params["conv1"]["w"].shape[2]
    c1 = params["conv1"]["w"].shape[3]
    c2 = params["conv2"]["w"].shape[3]
    h2, w2 = 2 * h_in, 2 * w_in

    s1, t1 = _fold_bn(params["conv1"])
    s2, t2 = _fold_bn(params["conv2"])

    return dict(
        r1=jnp.asarray(_row_select_matrices(h2, upsample=True)),      # (3, H2, H)
        wb1=jnp.asarray(_lane_band_matrices(params["conv1"]["w"], w2, upsample=True)),
        s1=jnp.asarray(np.tile(s1, w2).reshape(1, w2 * c1)),          # lane-tiled
        t1=jnp.asarray(np.tile(t1, w2).reshape(1, w2 * c1)),
        r2=jnp.asarray(_row_select_matrices(h2, upsample=False)),     # (3, H2, H2)
        wb2=jnp.asarray(_lane_band_matrices(params["conv2"]["w"], w2, upsample=False)),
        s2=jnp.asarray(np.tile(s2, w2).reshape(1, w2 * c2)),
        t2=jnp.asarray(np.tile(t2, w2).reshape(1, w2 * c2)),
        dims=(c_in, c1, c2, h_in, w_in),
    )


# ----------------------------------------------------------------------------
# Fused Pallas kernel: upsample + conv1+BN+ReLU + conv2+BN+ReLU per image.
# ----------------------------------------------------------------------------
def _segnet_up2_fused_kernel(x_ref, r1_ref, wb1_ref, s1_ref, t1_ref,
                             r2_ref, wb2_ref, s2_ref, t2_ref, o_ref):
    """Layout is (rows, W*C): channels live in the lane dimension, so every op
    is either a plain MXU matmul or a full-vreg VPU op.  No in-kernel pad,
    slice or reshape; the intermediate activation stays in registers/VMEM."""
    x = x_ref[0]                                           # (H, W*Cin)
    h2 = o_ref.shape[1]

    # --- conv1: fused 2x nearest upsample + 3x3 conv + folded BN + ReLU -----
    acc1 = jnp.zeros((h2, wb1_ref.shape[2]), jnp.float32)  # (H2, W2*C1)
    for kh in range(3):
        rows = jnp.dot(r1_ref[kh], x, preferred_element_type=jnp.float32)
        acc1 = acc1 + jnp.dot(rows, wb1_ref[kh],
                              preferred_element_type=jnp.float32)
    h1 = jnp.maximum(acc1 * s1_ref[...] + t1_ref[...], 0.0)

    # --- conv2: 3x3 conv + folded BN + ReLU ----------------------------------
    acc2 = jnp.zeros((h2, wb2_ref.shape[2]), jnp.float32)  # (H2, W2*C2)
    for kh in range(3):
        rows = jnp.dot(r2_ref[kh], h1, preferred_element_type=jnp.float32)
        acc2 = acc2 + jnp.dot(rows, wb2_ref[kh],
                              preferred_element_type=jnp.float32)
    y = jnp.maximum(acc2 * s2_ref[...] + t2_ref[...], 0.0)

    o_ref[0] = y.astype(o_ref.dtype)                       # lane-dense store


def segnet_up2_forward(prep, x_nchw):
    """segnetUp2.forward with indices=None / output_shape=None (NCHW I/O)."""
    # TODO(synk): nn.MaxUnpool2d(2,2) branch (indices / output_shape supplied)
    # is not implemented; only the default F.interpolate(scale_factor=2) path.
    c_in, c1, c2, h_in, w_in = prep["dims"]
    b = x_nchw.shape[0]
    h2, w2 = 2 * h_in, 2 * w_in

    # NCHW -> (B, H, W*Cin) lane-flattened NHWC (layout plumbing only).
    x_flat = jnp.transpose(x_nchw, (0, 2, 3, 1)).reshape(b, h_in, w_in * c_in)

    grid_spec = pltpu.PrefetchScalarGridSpec(
        num_scalar_prefetch=0,
        grid=(b,),
        in_specs=[
            pl.BlockSpec((1, h_in, w_in * c_in), lambda i: (i, 0, 0)),
            pl.BlockSpec(prep["r1"].shape, lambda i: (0, 0, 0)),
            pl.BlockSpec(prep["wb1"].shape, lambda i: (0, 0, 0)),
            pl.BlockSpec(prep["s1"].shape, lambda i: (0, 0)),
            pl.BlockSpec(prep["t1"].shape, lambda i: (0, 0)),
            pl.BlockSpec(prep["r2"].shape, lambda i: (0, 0, 0)),
            pl.BlockSpec(prep["wb2"].shape, lambda i: (0, 0, 0)),
            pl.BlockSpec(prep["s2"].shape, lambda i: (0, 0)),
            pl.BlockSpec(prep["t2"].shape, lambda i: (0, 0)),
        ],
        out_specs=pl.BlockSpec((1, h2, w2 * c2), lambda i: (i, 0, 0)),
    )
    out_flat = pl.pallas_call(
        _segnet_up2_fused_kernel,
        out_shape=jax.ShapeDtypeStruct((b, h2, w2 * c2), jnp.float32),
        grid_spec=grid_spec,
        compiler_params=pltpu.CompilerParams(
            dimension_semantics=("parallel",)),
    )(x_flat, prep["r1"], prep["wb1"], prep["s1"], prep["t1"],
      prep["r2"], prep["wb2"], prep["s2"], prep["t2"])

    # (B, H2, W2*C2) -> NCHW
    return jnp.transpose(out_flat.reshape(b, h2, w2, c2), (0, 3, 1, 2))


# ----------------------------------------------------------------------------
# Parameter init + pure-JAX reference (XLA conv) for correctness checking.
# ----------------------------------------------------------------------------
def init_params(key, in_size, out_size):
    """Deterministic synthetic params (Conv weight+bias, BN affine + stats)."""
    def conv_bn(k, cin, cout):
        k1, k2, k3, k4, k5, k6 = jax.random.split(k, 6)
        return dict(
            w=0.1 * jax.random.normal(k1, (3, 3, cin, cout), jnp.float32),  # HWIO
            b=0.1 * jax.random.normal(k2, (cout,), jnp.float32),
            gamma=1.0 + 0.1 * jax.random.normal(k3, (cout,), jnp.float32),
            beta=0.1 * jax.random.normal(k4, (cout,), jnp.float32),
            mean=0.1 * jax.random.normal(k5, (cout,), jnp.float32),
            var=1.0 + 0.1 * jax.random.uniform(k6, (cout,), jnp.float32),
        )
    k1, k2 = jax.random.split(key)
    return dict(conv1=conv_bn(k1, in_size, in_size),
                conv2=conv_bn(k2, in_size, out_size))


def _reference(params, x_nchw, eps=1e-5):
    x = jnp.transpose(x_nchw, (0, 2, 3, 1))
    x = jnp.repeat(jnp.repeat(x, 2, axis=1), 2, axis=2)     # nearest 2x upsample
    for name in ("conv1", "conv2"):
        p = params[name]
        y = jax.lax.conv_general_dilated(
            x, p["w"], (1, 1), "SAME",
            dimension_numbers=("NHWC", "HWIO", "NHWC"))
        y = y + p["b"]
        y = p["gamma"] * (y - p["mean"]) / jnp.sqrt(p["var"] + eps) + p["beta"]
        x = jnp.maximum(y, 0.0)
    return jnp.transpose(x, (0, 3, 1, 2))


if __name__ == "__main__":
    key = jax.random.PRNGKey(0)
    kx, kp = jax.random.split(key)

    in_size, out_size = 4, 8
    B, H, W = 2, 16, 16
    x = jax.random.normal(kx, (B, in_size, H, W), jnp.float32)   # NCHW input
    params = init_params(kp, in_size, out_size)
    prep = prepare_kernel_params(params, H, W)

    fwd = jax.jit(functools.partial(segnet_up2_forward, prep))
    out = jax.block_until_ready(fwd(x))

    ref = _reference(params, x)
    assert out.shape == (B, out_size, 2 * H, 2 * W), out.shape
    max_err = float(jnp.max(jnp.abs(out - ref)))
    assert jnp.allclose(out, ref, rtol=2e-3, atol=2e-3), max_err

    print("KERNEL_OK")
</pallas_src>

<mosaic_0001>
module attributes {stable_mosaic.version = 11 : i64} {
  func.func @_segnet_up2_fused_kernel(%arg0: i32, %arg1: memref<1x16x64xf32, #tpu.memory_space<vmem>>, %arg2: memref<3x32x16xf32, #tpu.memory_space<vmem>>, %arg3: memref<3x64x128xf32, #tpu.memory_space<vmem>>, %arg4: memref<1x128xf32, #tpu.memory_space<vmem>>, %arg5: memref<1x128xf32, #tpu.memory_space<vmem>>, %arg6: memref<3x32x32xf32, #tpu.memory_space<vmem>>, %arg7: memref<3x128x256xf32, #tpu.memory_space<vmem>>, %arg8: memref<1x256xf32, #tpu.memory_space<vmem>>, %arg9: memref<1x256xf32, #tpu.memory_space<vmem>>, %arg10: memref<1x32x256xf32, #tpu.memory_space<vmem>>) attributes {dimension_semantics = [#tpu.dimension_semantics<parallel>], iteration_bounds = array<i64: 2>, scalar_prefetch = 0 : i64, scratch_operands = 0 : i64, tpu.core_type = #tpu.core_type<tc>, window_params = [{transform_indices = @transform_0, window_bounds = array<i64: 1, 16, 64>}, {pipeline_mode = #tpu.pipeline_mode<synchronous>, transform_indices = @transform_1, window_bounds = array<i64: 3, 32, 16>}, {pipeline_mode = #tpu.pipeline_mode<synchronous>, transform_indices = @transform_2, window_bounds = array<i64: 3, 64, 128>}, {pipeline_mode = #tpu.pipeline_mode<synchronous>, transform_indices = @transform_3, window_bounds = array<i64: 1, 128>}, {pipeline_mode = #tpu.pipeline_mode<synchronous>, transform_indices = @transform_4, window_bounds = array<i64: 1, 128>}, {pipeline_mode = #tpu.pipeline_mode<synchronous>, transform_indices = @transform_5, window_bounds = array<i64: 3, 32, 32>}, {pipeline_mode = #tpu.pipeline_mode<synchronous>, transform_indices = @transform_6, window_bounds = array<i64: 3, 128, 256>}, {pipeline_mode = #tpu.pipeline_mode<synchronous>, transform_indices = @transform_7, window_bounds = array<i64: 1, 256>}, {pipeline_mode = #tpu.pipeline_mode<synchronous>, transform_indices = @transform_8, window_bounds = array<i64: 1, 256>}, {transform_indices = @transform_9, window_bounds = array<i64: 1, 32, 256>}]} {
    %c0 = arith.constant 0 : index
    %c0_0 = arith.constant 0 : index
    %c0_1 = arith.constant 0 : index
    %0 = vector.load %arg1[%c0, %c0_0, %c0_1] : memref<1x16x64xf32, #tpu.memory_space<vmem>>, vector<1x16x64xf32>
    %1 = vector.shape_cast %0 : vector<1x16x64xf32> to vector<16x64xf32>
    %cst = arith.constant 0.000000e+00 : f32
    %2 = vector.broadcast %cst : f32 to vector<32x128xf32>
    %c0_2 = arith.constant 0 : index
    %c0_3 = arith.constant 0 : index
    %c0_4 = arith.constant 0 : index
    %3 = vector.load %arg2[%c0_2, %c0_3, %c0_4] : memref<3x32x16xf32, #tpu.memory_space<vmem>>, vector<1x32x16xf32>
    %4 = vector.shape_cast %3 : vector<1x32x16xf32> to vector<32x16xf32>
    %cst_5 = arith.constant dense<0.000000e+00> : vector<32x64xf32>
    %5 = tpu.matmul %4, %1, %cst_5 {dimension_numbers = #tpu.dot_dimension_numbers<[1], [0], [0], [1], [0, 0, 1, 1], [], []>} : vector<32x16xf32>, vector<16x64xf32>, vector<32x64xf32> -> vector<32x64xf32>
    %c0_6 = arith.constant 0 : index
    %c0_7 = arith.constant 0 : index
    %c0_8 = arith.constant 0 : index
    %6 = vector.load %arg3[%c0_6, %c0_7, %c0_8] : memref<3x64x128xf32, #tpu.memory_space<vmem>>, vector<1x64x128xf32>
    %7 = vector.shape_cast %6 : vector<1x64x128xf32> to vector<64x128xf32>
    %cst_9 = arith.constant dense<0.000000e+00> : vector<32x128xf32>
    %8 = tpu.matmul %5, %7, %cst_9 {dimension_numbers = #tpu.dot_dimension_numbers<[1], [0], [0], [1], [0, 0, 1, 1], [], []>} : vector<32x64xf32>, vector<64x128xf32>, vector<32x128xf32> -> vector<32x128xf32>
    %9 = arith.addf %2, %8 : vector<32x128xf32>
    %c1 = arith.constant 1 : index
    %c0_10 = arith.constant 0 : index
    %c0_11 = arith.constant 0 : index
    %10 = vector.load %arg2[%c1, %c0_10, %c0_11] : memref<3x32x16xf32, #tpu.memory_space<vmem>>, vector<1x32x16xf32>
    %11 = vector.shape_cast %10 : vector<1x32x16xf32> to vector<32x16xf32>
    %cst_12 = arith.constant dense<0.000000e+00> : vector<32x64xf32>
    %12 = tpu.matmul %11, %1, %cst_12 {dimension_numbers = #tpu.dot_dimension_numbers<[1], [0], [0], [1], [0, 0, 1, 1], [], []>} : vector<32x16xf32>, vector<16x64xf32>, vector<32x64xf32> -> vector<32x64xf32>
    %c1_13 = arith.constant 1 : index
    %c0_14 = arith.constant 0 : index
    %c0_15 = arith.constant 0 : index
    %13 = vector.load %arg3[%c1_13, %c0_14, %c0_15] : memref<3x64x128xf32, #tpu.memory_space<vmem>>, vector<1x64x128xf32>
    %14 = vector.shape_cast %13 : vector<1x64x128xf32> to vector<64x128xf32>
    %cst_16 = arith.constant dense<0.000000e+00> : vector<32x128xf32>
    %15 = tpu.matmul %12, %14, %cst_16 {dimension_numbers = #tpu.dot_dimension_numbers<[1], [0], [0], [1], [0, 0, 1, 1], [], []>} : vector<32x64xf32>, vector<64x128xf32>, vector<32x128xf32> -> vector<32x128xf32>
    %16 = arith.addf %9, %15 : vector<32x128xf32>
    %c2 = arith.constant 2 : index
    %c0_17 = arith.constant 0 : index
    %c0_18 = arith.constant 0 : index
    %17 = vector.load %arg2[%c2, %c0_17, %c0_18] : memref<3x32x16xf32, #tpu.memory_space<vmem>>, vector<1x32x16xf32>
    %18 = vector.shape_cast %17 : vector<1x32x16xf32> to vector<32x16xf32>
    %cst_19 = arith.constant dense<0.000000e+00> : vector<32x64xf32>
    %19 = tpu.matmul %18, %1, %cst_19 {dimension_numbers = #tpu.dot_dimension_numbers<[1], [0], [0], [1], [0, 0, 1, 1], [], []>} : vector<32x16xf32>, vector<16x64xf32>, vector<32x64xf32> -> vector<32x64xf32>
    %c2_20 = arith.constant 2 : index
    %c0_21 = arith.constant 0 : index
    %c0_22 = arith.constant 0 : index
    %20 = vector.load %arg3[%c2_20, %c0_21, %c0_22] : memref<3x64x128xf32, #tpu.memory_space<vmem>>, vector<1x64x128xf32>
    %21 = vector.shape_cast %20 : vector<1x64x128xf32> to vector<64x128xf32>
    %cst_23 = arith.constant dense<0.000000e+00> : vector<32x128xf32>
    %22 = tpu.matmul %19, %21, %cst_23 {dimension_numbers = #tpu.dot_dimension_numbers<[1], [0], [0], [1], [0, 0, 1, 1], [], []>} : vector<32x64xf32>, vector<64x128xf32>, vector<32x128xf32> -> vector<32x128xf32>
    %23 = arith.addf %16, %22 : vector<32x128xf32>
    %c0_24 = arith.constant 0 : index
    %c0_25 = arith.constant 0 : index
    %24 = vector.load %arg4[%c0_24, %c0_25] : memref<1x128xf32, #tpu.memory_space<vmem>>, vector<1x128xf32>
    %25 = vector.broadcast %24 : vector<1x128xf32> to vector<32x128xf32>
    %26 = arith.mulf %23, %25 : vector<32x128xf32>
    %c0_26 = arith.constant 0 : index
    %c0_27 = arith.constant 0 : index
    %27 = vector.load %arg5[%c0_26, %c0_27] : memref<1x128xf32, #tpu.memory_space<vmem>>, vector<1x128xf32>
    %28 = vector.broadcast %27 : vector<1x128xf32> to vector<32x128xf32>
    %29 = arith.addf %26, %28 : vector<32x128xf32>
    %cst_28 = arith.constant 0.000000e+00 : f32
    %30 = vector.broadcast %cst_28 : f32 to vector<32x128xf32>
    %31 = arith.maximumf %29, %30 : vector<32x128xf32>
    %cst_29 = arith.constant 0.000000e+00 : f32
    %32 = vector.broadcast %cst_29 : f32 to vector<32x256xf32>
    %c0_30 = arith.constant 0 : index
    %c0_31 = arith.constant 0 : index
    %c0_32 = arith.constant 0 : index
    %33 = vector.load %arg6[%c0_30, %c0_31, %c0_32] : memref<3x32x32xf32, #tpu.memory_space<vmem>>, vector<1x32x32xf32>
    %34 = vector.shape_cast %33 : vector<1x32x32xf32> to vector<32x32xf32>
    %cst_33 = arith.constant dense<0.000000e+00> : vector<32x128xf32>
    %35 = tpu.matmul %34, %31, %cst_33 {dimension_numbers = #tpu.dot_dimension_numbers<[1], [0], [0], [1], [0, 0, 1, 1], [], []>} : vector<32x32xf32>, vector<32x128xf32>, vector<32x128xf32> -> vector<32x128xf32>
    %c0_34 = arith.constant 0 : index
    %c0_35 = arith.constant 0 : index
    %c0_36 = arith.constant 0 : index
    %36 = vector.load %arg7[%c0_34, %c0_35, %c0_36] : memref<3x128x256xf32, #tpu.memory_space<vmem>>, vector<1x128x256xf32>
    %37 = vector.shape_cast %36 : vector<1x128x256xf32> to vector<128x256xf32>
    %cst_37 = arith.constant dense<0.000000e+00> : vector<32x256xf32>
    %38 = tpu.matmul %35, %37, %cst_37 {dimension_numbers = #tpu.dot_dimension_numbers<[1], [0], [0], [1], [0, 0, 1, 1], [], []>} : vector<32x128xf32>, vector<128x256xf32>, vector<32x256xf32> -> vector<32x256xf32>
    %39 = arith.addf %32, %38 : vector<32x256xf32>
    %c1_38 = arith.constant 1 : index
    %c0_39 = arith.constant 0 : index
    %c0_40 = arith.constant 0 : index
    %40 = vector.load %arg6[%c1_38, %c0_39, %c0_40] : memref<3x32x32xf32, #tpu.memory_space<vmem>>, vector<1x32x32xf32>
    %41 = vector.shape_cast %40 : vector<1x32x32xf32> to vector<32x32xf32>
    %cst_41 = arith.constant dense<0.000000e+00> : vector<32x128xf32>
    %42 = tpu.matmul %41, %31, %cst_41 {dimension_numbers = #tpu.dot_dimension_numbers<[1], [0], [0], [1], [0, 0, 1, 1], [], []>} : vector<32x32xf32>, vector<32x128xf32>, vector<32x128xf32> -> vector<32x128xf32>
    %c1_42 = arith.constant 1 : index
    %c0_43 = arith.constant 0 : index
    %c0_44 = arith.constant 0 : index
    %43 = vector.load %arg7[%c1_42, %c0_43, %c0_44] : memref<3x128x256xf32, #tpu.memory_space<vmem>>, vector<1x128x256xf32>
    %44 = vector.shape_cast %43 : vector<1x128x256xf32> to vector<128x256xf32>
    %cst_45 = arith.constant dense<0.000000e+00> : vector<32x256xf32>
    %45 = tpu.matmul %42, %44, %cst_45 {dimension_numbers = #tpu.dot_dimension_numbers<[1], [0], [0], [1], [0, 0, 1, 1], [], []>} : vector<32x128xf32>, vector<128x256xf32>, vector<32x256xf32> -> vector<32x256xf32>
    %46 = arith.addf %39, %45 : vector<32x256xf32>
    %c2_46 = arith.constant 2 : index
    %c0_47 = arith.constant 0 : index
    %c0_48 = arith.constant 0 : index
    %47 = vector.load %arg6[%c2_46, %c0_47, %c0_48] : memref<3x32x32xf32, #tpu.memory_space<vmem>>, vector<1x32x32xf32>
    %48 = vector.shape_cast %47 : vector<1x32x32xf32> to vector<32x32xf32>
    %cst_49 = arith.constant dense<0.000000e+00> : vector<32x128xf32>
    %49 = tpu.matmul %48, %31, %cst_49 {dimension_numbers = #tpu.dot_dimension_numbers<[1], [0], [0], [1], [0, 0, 1, 1], [], []>} : vector<32x32xf32>, vector<32x128xf32>, vector<32x128xf32> -> vector<32x128xf32>
    %c2_50 = arith.constant 2 : index
    %c0_51 = arith.constant 0 : index
    %c0_52 = arith.constant 0 : index
    %50 = vector.load %arg7[%c2_50, %c0_51, %c0_52] : memref<3x128x256xf32, #tpu.memory_space<vmem>>, vector<1x128x256xf32>
    %51 = vector.shape_cast %50 : vector<1x128x256xf32> to vector<128x256xf32>
    %cst_53 = arith.constant dense<0.000000e+00> : vector<32x256xf32>
    %52 = tpu.matmul %49, %51, %cst_53 {dimension_numbers = #tpu.dot_dimension_numbers<[1], [0], [0], [1], [0, 0, 1, 1], [], []>} : vector<32x128xf32>, vector<128x256xf32>, vector<32x256xf32> -> vector<32x256xf32>
    %53 = arith.addf %46, %52 : vector<32x256xf32>
    %c0_54 = arith.constant 0 : index
    %c0_55 = arith.constant 0 : index
    %54 = vector.load %arg8[%c0_54, %c0_55] : memref<1x256xf32, #tpu.memory_space<vmem>>, vector<1x256xf32>
    %55 = vector.broadcast %54 : vector<1x256xf32> to vector<32x256xf32>
    %56 = arith.mulf %53, %55 : vector<32x256xf32>
    %c0_56 = arith.constant 0 : index
    %c0_57 = arith.constant 0 : index
    %57 = vector.load %arg9[%c0_56, %c0_57] : memref<1x256xf32, #tpu.memory_space<vmem>>, vector<1x256xf32>
    %58 = vector.broadcast %57 : vector<1x256xf32> to vector<32x256xf32>
    %59 = arith.addf %56, %58 : vector<32x256xf32>
    %cst_58 = arith.constant 0.000000e+00 : f32
    %60 = vector.broadcast %cst_58 : f32 to vector<32x256xf32>
    %61 = arith.maximumf %59, %60 : vector<32x256xf32>
    %c0_59 = arith.constant 0 : index
    %c0_60 = arith.constant 0 : index
    %c0_61 = arith.constant 0 : index
    %62 = vector.load %arg10[%c0_59, %c0_60, %c0_61] : memref<1x32x256xf32, #tpu.memory_space<vmem>>, vector<1x32x256xf32>
    %63 = vector.shape_cast %62 : vector<1x32x256xf32> to vector<32x256xf32>
    %64 = vector.shape_cast %61 : vector<32x256xf32> to vector<1x32x256xf32>
    tpu.vector_store %arg10[%c0_59, %c0_60, %c0_61], %64 {strides = array<i32>} : memref<1x32x256xf32, #tpu.memory_space<vmem>>, vector<1x32x256xf32>,
    return
  }
  func.func @transform_0(%arg0: i32) -> (i32, i32, i32) {
    %c0_i32 = arith.constant 0 : i32
    %c0_i32_0 = arith.constant 0 : i32
    %c0_i32_1 = arith.constant 0 : i32
    return %arg0, %c0_i32, %c0_i32_0 : i32, i32, i32
  }
  func.func @transform_1(%arg0: i32) -> (i32, i32, i32) {
    %c0_i32 = arith.constant 0 : i32
    %c0_i32_0 = arith.constant 0 : i32
    %c0_i32_1 = arith.constant 0 : i32
    %c0_i32_2 = arith.constant 0 : i32
    return %c0_i32, %c0_i32_0, %c0_i32_1 : i32, i32, i32
  }
  func.func @transform_2(%arg0: i32) -> (i32, i32, i32) {
    %c0_i32 = arith.constant 0 : i32
    %c0_i32_0 = arith.constant 0 : i32
    %c0_i32_1 = arith.constant 0 : i32
    %c0_i32_2 = arith.constant 0 : i32
    return %c0_i32, %c0_i32_0, %c0_i32_1 : i32, i32, i32
  }
  func.func @transform_3(%arg0: i32) -> (i32, i32) {
    %c0_i32 = arith.constant 0 : i32
    %c0_i32_0 = arith.constant 0 : i32
    %c0_i32_1 = arith.constant 0 : i32
    return %c0_i32, %c0_i32_0 : i32, i32
  }
  func.func @transform_4(%arg0: i32) -> (i32, i32) {
    %c0_i32 = arith.constant 0 : i32
    %c0_i32_0 = arith.constant 0 : i32
    %c0_i32_1 = arith.constant 0 : i32
    return %c0_i32, %c0_i32_0 : i32, i32
  }
  func.func @transform_5(%arg0: i32) -> (i32, i32, i32) {
    %c0_i32 = arith.constant 0 : i32
    %c0_i32_0 = arith.constant 0 : i32
    %c0_i32_1 = arith.constant 0 : i32
    %c0_i32_2 = arith.constant 0 : i32
    return %c0_i32, %c0_i32_0, %c0_i32_1 : i32, i32, i32
  }
  func.func @transform_6(%arg0: i32) -> (i32, i32, i32) {
    %c0_i32 = arith.constant 0 : i32
    %c0_i32_0 = arith.constant 0 : i32
    %c0_i32_1 = arith.constant 0 : i32
    %c0_i32_2 = arith.constant 0 : i32
    return %c0_i32, %c0_i32_0, %c0_i32_1 : i32, i32, i32
  }
  func.func @transform_7(%arg0: i32) -> (i32, i32) {
    %c0_i32 = arith.constant 0 : i32
    %c0_i32_0 = arith.constant 0 : i32
    %c0_i32_1 = arith.constant 0 : i32
    return %c0_i32, %c0_i32_0 : i32, i32
  }
  func.func @transform_8(%arg0: i32) -> (i32, i32) {
    %c0_i32 = arith.constant 0 : i32
    %c0_i32_0 = arith.constant 0 : i32
    %c0_i32_1 = arith.constant 0 : i32
    return %c0_i32, %c0_i32_0 : i32, i32
  }
  func.func @transform_9(%arg0: i32) -> (i32, i32, i32) {
    %c0_i32 = arith.constant 0 : i32
    %c0_i32_0 = arith.constant 0 : i32
    %c0_i32_1 = arith.constant 0 : i32
    return %arg0, %c0_i32, %c0_i32_0 : i32, i32, i32
  }
}

</mosaic_0001>

<llo_original>
// kernel: segnet_up2_forward.1
$region0: #{segnet_up2_forward.1}
  #allocation0 [shape = 'u32[]', space=smem, size = 0x4, offset = 0x4, fixed_abs, tag = 'smem constant byte address 0x4 - core index']
  #allocation1 [shape = 'u32[72,128]{1,0:T(1,128)}', space=vmem, size = 0x9000, scoped, tag = 'internal scratch']
  %s0 = inlined_call_operand.vmem [shape: f32[2,16,64], index: 0, kind: input, shape index: {}]
  %s1 = inlined_call_operand.vmem [shape: f32[3,32,16], index: 1, kind: input, shape index: {}]
  %s2 = inlined_call_operand.vmem [shape: f32[3,64,128], index: 2, kind: input, shape index: {}]
  %s3 = inlined_call_operand.vmem [shape: f32[1,128], index: 3, kind: input, shape index: {}]
  %s4 = inlined_call_operand.vmem [shape: f32[1,128], index: 4, kind: input, shape index: {}]
  %s5 = inlined_call_operand.vmem [shape: f32[3,32,32], index: 5, kind: input, shape index: {}]
  %s6 = inlined_call_operand.hbm [shape: f32[3,128,256], index: 6, kind: input, shape index: {}]
  %s7 = inlined_call_operand.vmem [shape: f32[1,256], index: 7, kind: input, shape index: {}]
  %s8 = inlined_call_operand.vmem [shape: f32[1,256], index: 8, kind: input, shape index: {}]
  %s9 = inlined_call_operand.vmem [shape: f32[2,32,256], index: 9, kind: output, shape index: {}]
  %s10 = sld [smem:[#allocation0]]
  $region73: #{segnet_up2_forward.1} parent=0
    _
  %s12 = ssub.s32 1, %s10
  %s13 = scalar_select 0, %s12, %s10
  $region1: #{segnet_up2_forward.1} parent=0
    #allocation2 [shape = 'u8[393216]{0}', space=vmem, size = 0x60000, scoped, tag = 'input window, operand 6, single buffered']
    #allocation3 [shape = 's32[2]{0}', space=sflag, size = 0x8, scoped, tag = 'scoped memory for segnet_up2_forward.1']
    %14 = vsyncpa [#allocation3], 0
    loop: start=0, step=1, limit=4
    $region2: #{segnet_up2_forward.1} parent=1 // loop_pre_header
      _
    $region3: #{segnet_up2_forward.1} parent=1 // loop_header
      %s16 = sphi 0, %s20
      %p17 = scmp.ge.s32.totalorder %s16, 4
      %s26 = sphi 0, %s28
      %s29 = sphi 0, %s26
      %s30 = sphi 0, %s29
      %s46 = sphi 0, %s30
      %s50 = sphi 0, %s50
      %s52 = sphi 0, %s50
      %s53 = sphi 0, %s52
      %s67 = sphi 0, %s53
      %s71 = sphi 0, %s71
      %s73 = sphi 0, %s71
      %s74 = sphi 0, %s73
      %s88 = sphi 0, %s74
      %s92 = sphi 0, %s92
      %s94 = sphi 0, %s92
      %s95 = sphi 0, %s94
      %s109 = sphi 0, %s95
      %s113 = sphi 0, %s113
      %s115 = sphi 0, %s113
      %s116 = sphi 0, %s115
      %s130 = sphi 0, %s116
      %s134 = sphi 0, %s134
      %s136 = sphi 0, %s134
      %s137 = sphi 0, %s136
      %s151 = sphi 0, %s137
      %s155 = sphi 0, %s155
      %s157 = sphi 0, %s155
      %s158 = sphi 0, %s157
      %s172 = sphi 0, %s158
      %s176 = sphi 0, %s176
      %s178 = sphi 0, %s176
      %s179 = sphi 0, %s178
      %s193 = sphi 0, %s179
      %s197 = sphi 0, %s197
      %s199 = sphi 0, %s197
      %s200 = sphi 0, %s199
      %s214 = sphi 0, %s200
      %s220 = sphi 0, %s222
      %s223 = sphi 0, %s220
      %s224 = sphi 0, %s223
      %s240 = sphi 0, %s224
    $region4: #{segnet_up2_forward.1} parent=1 // loop_header_branch
      %19 = sbr.rel (%p17) target = $region8
    $region5: #{segnet_up2_forward.1} parent=1 // loop_body
      %s21 = ssub.s32 %s16, 1
      %s22 = ssub.s32 %s16, 2
      %s23 = sadd.s32 %s16, 1
      %s24 = ssub.s32 %s16, %s23
      %p25 = scmp.eq.s32.totalorder %s24, 0
      %s27 = sadd.s32 %s26, 1
      %s28 = scalar_select %p25, %s26, %s27
      %p31 = pneg %p25
      %p32 = scmp.eq.s32.totalorder %s16, 1
      %p33 = por %p31, %p32
      %p34 = scmp.ne.s32.totalorder %s26, %s29
      %p35 = scmp.eq.s32.totalorder %s16, 0
      %p36 = por %p34, %p35
      %p37 = scmp.ne.s32.totalorder %s26, %s29
      %p38 = scmp.eq.s32.totalorder %s21, 1
      %p39 = por %p37, %p38
      %p40 = scmp.ne.s32.totalorder %s29, %s30
      %p41 = scmp.eq.s32.totalorder %s21, 0
      %p42 = por %p40, %p41
      %p43 = scmp.ne.s32.totalorder %s29, %s30
      %p44 = scmp.eq.s32.totalorder %s22, 1
      %p45 = por %p43, %p44
      %p47 = scmp.ne.s32.totalorder %s30, %s46
      %p48 = scmp.eq.s32.totalorder %s22, 0
      %p49 = por %p47, %p48
      %s51 = sadd.s32 %s50, 1
      %p54 = scmp.eq.s32.totalorder %s16, 1
      %p55 = scmp.ne.s32.totalorder %s50, %s52
      %p56 = scmp.eq.s32.totalorder %s16, 0
      %p57 = por %p55, %p56
      %p58 = scmp.ne.s32.totalorder %s50, %s52
      %p59 = scmp.eq.s32.totalorder %s21, 1
      %p60 = por %p58, %p59
      %p61 = scmp.ne.s32.totalorder %s52, %s53
      %p62 = scmp.eq.s32.totalorder %s21, 0
      %p63 = por %p61, %p62
      %p64 = scmp.ne.s32.totalorder %s52, %s53
      %p65 = scmp.eq.s32.totalorder %s22, 1
      %p66 = por %p64, %p65
      %p68 = scmp.ne.s32.totalorder %s53, %s67
      %p69 = scmp.eq.s32.totalorder %s22, 0
      %p70 = por %p68, %p69
      %s72 = sadd.s32 %s71, 1
      %p75 = scmp.eq.s32.totalorder %s16, 1
      %p76 = scmp.ne.s32.totalorder %s71, %s73
      %p77 = scmp.eq.s32.totalorder %s16, 0
      %p78 = por %p76, %p77
      %p79 = scmp.ne.s32.totalorder %s71, %s73
      %p80 = scmp.eq.s32.totalorder %s21, 1
      %p81 = por %p79, %p80
      %p82 = scmp.ne.s32.totalorder %s73, %s74
      %p83 = scmp.eq.s32.totalorder %s21, 0
      %p84 = por %p82, %p83
      %p85 = scmp.ne.s32.totalorder %s73, %s74
      %p86 = scmp.eq.s32.totalorder %s22, 1
      %p87 = por %p85, %p86
      %p89 = scmp.ne.s32.totalorder %s74, %s88
      %p90 = scmp.eq.s32.totalorder %s22, 0
      %p91 = por %p89, %p90
      %s93 = sadd.s32 %s92, 1
      %p96 = scmp.eq.s32.totalorder %s16, 1
      %p97 = scmp.ne.s32.totalorder %s92, %s94
      %p98 = scmp.eq.s32.totalorder %s16, 0
      %p99 = por %p97, %p98
      %p100 = scmp.ne.s32.totalorder %s92, %s94
      %p101 = scmp.eq.s32.totalorder %s21, 1
      %p102 = por %p100, %p101
      %p103 = scmp.ne.s32.totalorder %s94, %s95
      %p104 = scmp.eq.s32.totalorder %s21, 0
      %p105 = por %p103, %p104
      %p106 = scmp.ne.s32.totalorder %s94, %s95
      %p107 = scmp.eq.s32.totalorder %s22, 1
      %p108 = por %p106, %p107
      %p110 = scmp.ne.s32.totalorder %s95, %s109
      %p111 = scmp.eq.s32.totalorder %s22, 0
      %p112 = por %p110, %p111
      %s114 = sadd.s32 %s113, 1
      %p117 = scmp.eq.s32.totalorder %s16, 1
      %p118 = scmp.ne.s32.totalorder %s113, %s115
      %p119 = scmp.eq.s32.totalorder %s16, 0
      %p120 = por %p118, %p119
      %p121 = scmp.ne.s32.totalorder %s113, %s115
      %p122 = scmp.eq.s32.totalorder %s21, 1
      %p123 = por %p121, %p122
      %p124 = scmp.ne.s32.totalorder %s115, %s116
      %p125 = scmp.eq.s32.totalorder %s21, 0
      %p126 = por %p124, %p125
      %p127 = scmp.ne.s32.totalorder %s115, %s116
      %p128 = scmp.eq.s32.totalorder %s22, 1
      %p129 = por %p127, %p128
      %p131 = scmp.ne.s32.totalorder %s116, %s130
      %p132 = scmp.eq.s32.totalorder %s22, 0
      %p133 = por %p131, %p132
      %s135 = sadd.s32 %s134, 1
      %p138 = scmp.eq.s32.totalorder %s16, 1
      %p139 = scmp.ne.s32.totalorder %s134, %s136
      %p140 = scmp.eq.s32.totalorder %s16, 0
      %p141 = por %p139, %p140
      %p142 = scmp.ne.s32.totalorder %s134, %s136
      %p143 = scmp.eq.s32.totalorder %s21, 1
      %p144 = por %p142, %p143
      %p145 = scmp.ne.s32.totalorder %s136, %s137
      %p146 = scmp.eq.s32.totalorder %s21, 0
      %p147 = por %p145, %p146
      %p148 = scmp.ne.s32.totalorder %s136, %s137
      %p149 = scmp.eq.s32.totalorder %s22, 1
      %p150 = por %p148, %p149
      %p152 = scmp.ne.s32.totalorder %s137, %s151
      %p153 = scmp.eq.s32.totalorder %s22, 0
      %p154 = por %p152, %p153
      %s156 = sadd.s32 %s155, 1
      %p159 = scmp.eq.s32.totalorder %s16, 1
      %p160 = scmp.ne.s32.totalorder %s155, %s157
      %p161 = scmp.eq.s32.totalorder %s16, 0
      %p162 = por %p160, %p161
      %p163 = scmp.ne.s32.totalorder %s155, %s157
      %p164 = scmp.eq.s32.totalorder %s21, 1
      %p165 = por %p163, %p164
      %p166 = scmp.ne.s32.totalorder %s157, %s158
      %p167 = scmp.eq.s32.totalorder %s21, 0
      %p168 = por %p166, %p167
      %p169 = scmp.ne.s32.totalorder %s157, %s158
      %p170 = scmp.eq.s32.totalorder %s22, 1
      %p171 = por %p169, %p170
      %p173 = scmp.ne.s32.totalorder %s158, %s172
      %p174 = scmp.eq.s32.totalorder %s22, 0
      %p175 = por %p173, %p174
      %s177 = sadd.s32 %s176, 1
      %p180 = scmp.eq.s32.totalorder %s16, 1
      %p181 = scmp.ne.s32.totalorder %s176, %s178
      %p182 = scmp.eq.s32.totalorder %s16, 0
      %p183 = por %p181, %p182
      %p184 = scmp.ne.s32.totalorder %s176, %s178
      %p185 = scmp.eq.s32.totalorder %s21, 1
      %p186 = por %p184, %p185
      %p187 = scmp.ne.s32.totalorder %s178, %s179
      %p188 = scmp.eq.s32.totalorder %s21, 0
      %p189 = por %p187, %p188
      %p190 = scmp.ne.s32.totalorder %s178, %s179
      %p191 = scmp.eq.s32.totalorder %s22, 1
      %p192 = por %p190, %p191
      %p194 = scmp.ne.s32.totalorder %s179, %s193
      %p195 = scmp.eq.s32.totalorder %s22, 0
      %p196 = por %p194, %p195
      %s198 = sadd.s32 %s197, 1
      %p201 = scmp.eq.s32.totalorder %s16, 1
      %p202 = scmp.ne.s32.totalorder %s197, %s199
      %p203 = scmp.eq.s32.totalorder %s16, 0
      %p204 = por %p202, %p203
      %p205 = scmp.ne.s32.totalorder %s197, %s199
      %p206 = scmp.eq.s32.totalorder %s21, 1
      %p207 = por %p205, %p206
      %p208 = scmp.ne.s32.totalorder %s199, %s200
      %p209 = scmp.eq.s32.totalorder %s21, 0
      %p210 = por %p208, %p209
      %p211 = scmp.ne.s32.totalorder %s199, %s200
      %p212 = scmp.eq.s32.totalorder %s22, 1
      %p213 = por %p211, %p212
      %p215 = scmp.ne.s32.totalorder %s200, %s214
      %p216 = scmp.eq.s32.totalorder %s22, 0
      %p217 = por %p215, %p216
      %s218 = ssub.s32 %s16, %s23
      %p219 = scmp.eq.s32.totalorder %s218, 0
      %s221 = sadd.s32 %s220, 1
      %s222 = scalar_select %p219, %s220, %s221
      %p225 = pneg %p219
      %p226 = scmp.eq.s32.totalorder %s16, 1
      %p227 = por %p225, %p226
      %p228 = scmp.ne.s32.totalorder %s220, %s223
      %p229 = scmp.eq.s32.totalorder %s16, 0
      %p230 = por %p228, %p229
      %p231 = scmp.ne.s32.totalorder %s220, %s223
      %p232 = scmp.eq.s32.totalorder %s21, 1
      %p233 = por %p231, %p232
      %p234 = scmp.ne.s32.totalorder %s223, %s224
      %p235 = scmp.eq.s32.totalorder %s21, 0
      %p236 = por %p234, %p235
      %p237 = scmp.ne.s32.totalorder %s223, %s224
      %p238 = scmp.eq.s32.totalorder %s22, 1
      %p239 = por %p237, %p238
      %p241 = scmp.ne.s32.totalorder %s224, %s240
      %p242 = scmp.eq.s32.totalorder %s22, 0
      %p243 = por %p241, %p242
      %p244 = scmp.le.s32.totalorder 1, %s16
      %p245 = scmp.lt.s32.totalorder %s16, 3
      %p246 = pnand %p244, %p245
      %p247 = pneg %p246
      // Predicated region
      $region9: #{segnet_up2_forward.1} parent=5 // pred_check
        _
      $region10: #{segnet_up2_forward.1} parent=5 // pred_check_branch
        %249 = sbr.rel (%p246) target = $region12
      $region11: #{segnet_up2_forward.1} parent=5 // pred_region
        %s250 = ssub.s32 %s16, 1
        // Predicated region
        $region13: #{segnet_up2_forward.1} parent=11 // pred_check
          %p251 = pneg %p63
        $region14: #{segnet_up2_forward.1} parent=11 // pred_check_branch
          %253 = sbr.rel (%p251) target = $region16
        $region15: #{segnet_up2_forward.1} parent=11 // pred_region
          _
        $region16: #{segnet_up2_forward.1} parent=11 // pred_fallthru
          _
        // Predicated region
        $region17: #{segnet_up2_forward.1} parent=11 // pred_check
          %p254 = pneg %p84
        $region18: #{segnet_up2_forward.1} parent=11 // pred_check_branch
          %256 = sbr.rel (%p254) target = $region20
        $region19: #{segnet_up2_forward.1} parent=11 // pred_region
          _
        $region20: #{segnet_up2_forward.1} parent=11 // pred_fallthru
          _
        // Predicated region
        $region21: #{segnet_up2_forward.1} parent=11 // pred_check
          %p257 = pneg %p105
        $region22: #{segnet_up2_forward.1} parent=11 // pred_check_branch
          %259 = sbr.rel (%p257) target = $region24
        $region23: #{segnet_up2_forward.1} parent=11 // pred_region
          _
        $region24: #{segnet_up2_forward.1} parent=11 // pred_fallthru
          _
        // Predicated region
        $region25: #{segnet_up2_forward.1} parent=11 // pred_check
          %p260 = pneg %p126
        $region26: #{segnet_up2_forward.1} parent=11 // pred_check_branch
          %262 = sbr.rel (%p260) target = $region28
        $region27: #{segnet_up2_forward.1} parent=11 // pred_region
          _
        $region28: #{segnet_up2_forward.1} parent=11 // pred_fallthru
          _
        // Predicated region
        $region29: #{segnet_up2_forward.1} parent=11 // pred_check
          %p263 = pneg %p147
        $region30: #{segnet_up2_forward.1} parent=11 // pred_check_branch
          %265 = sbr.rel (%p263) target = $region32
        $region31: #{segnet_up2_forward.1} parent=11 // pred_region
          _
        $region32: #{segnet_up2_forward.1} parent=11 // pred_fallthru
          _
        // Predicated region
        $region33: #{segnet_up2_forward.1} parent=11 // pred_check
          %p266 = pneg %p168
        $region34: #{segnet_up2_forward.1} parent=11 // pred_check_branch
          %268 = sbr.rel (%p266) target = $region36
        $region35: #{segnet_up2_forward.1} parent=11 // pred_region
          %270 = vsyncadd [#allocation3], 0
          %s271 = sshll.u32 %s6, 4
          %s272 = int_to_ptr.hbm [resolvable:$true] %s271
          %s273 = sshll.u32 [#allocation2], 4
          %s274 = int_to_ptr.vmem [resolvable:$true] %s273
          %279 = dma.hbm_to_vmem [thread:$0]  %s272, 12288, %s274, [#allocation3], 256, 256, 16
        $region36: #{segnet_up2_forward.1} parent=11 // pred_fallthru
          _
        // Predicated region
        $region37: #{segnet_up2_forward.1} parent=11 // pred_check
          %p280 = pneg %p189
        $region38: #{segnet_up2_forward.1} parent=11 // pred_check_branch
          %282 = sbr.rel (%p280) target = $region40
        $region39: #{segnet_up2_forward.1} parent=11 // pred_region
          _
        $region40: #{segnet_up2_forward.1} parent=11 // pred_fallthru
          _
        // Predicated region
        $region41: #{segnet_up2_forward.1} parent=11 // pred_check
          %p283 = pneg %p210
        $region42: #{segnet_up2_forward.1} parent=11 // pred_check_branch
          %285 = sbr.rel (%p283) target = $region44
        $region43: #{segnet_up2_forward.1} parent=11 // pred_region
          _
        $region44: #{segnet_up2_forward.1} parent=11 // pred_fallthru
          _
      $region12: #{segnet_up2_forward.1} parent=5 // pred_fallthru
        _
      %p286 = scmp.lt.s32.totalorder %s16, 2
      // Predicated region
      $region45: #{segnet_up2_forward.1} parent=5 // pred_check
        %p287 = pneg %p286
      $region46: #{segnet_up2_forward.1} parent=5 // pred_check_branch
        %289 = sbr.rel (%p287) target = $region48
      $region47: #{segnet_up2_forward.1} parent=5 // pred_region
        // Predicated region
        $region49: #{segnet_up2_forward.1} parent=47 // pred_check
          %p290 = pneg %p36
        $region50: #{segnet_up2_forward.1} parent=47 // pred_check_branch
          %292 = sbr.rel (%p290) target = $region52
        $region51: #{segnet_up2_forward.1} parent=47 // pred_region
          %p293 = scmp.lt.s32.totalorder %s16, 1
          %s294 = scalar_select %p293, %s16, 1
          %s295 = smul.addr %s294, 2
          %s296 = smul.addr %s295, 8
          %s297 = scalar_lea.vmem %s0, %s296
        $region52: #{segnet_up2_forward.1} parent=47 // pred_fallthru
          _
      $region48: #{segnet_up2_forward.1} parent=5 // pred_fallthru
        _
      %p298 = scmp.le.s32.totalorder 1, %s16
      %p299 = scmp.lt.s32.totalorder %s16, 3
      %p300 = pnand %p298, %p299
      %p301 = pneg %p300
      // Predicated region
      $region53: #{segnet_up2_forward.1} parent=5 // pred_check
        _
      $region54: #{segnet_up2_forward.1} parent=5 // pred_check_branch
        %303 = sbr.rel (%p300) target = $region56
      $region55: #{segnet_up2_forward.1} parent=5 // pred_region
        %s304 = ssub.s32 %s16, 1
        // Predicated region
        $region57: #{segnet_up2_forward.1} parent=55 // pred_check
          %p305 = pneg %p168
        $region58: #{segnet_up2_forward.1} parent=55 // pred_check_branch
          %307 = sbr.rel (%p305) target = $region60
        $region59: #{segnet_up2_forward.1} parent=55 // pred_region
          %309 = dma.done [#allocation3], 12288
        $region60: #{segnet_up2_forward.1} parent=55 // pred_fallthru
          _
        %p310 = scmp.lt.s32.totalorder %s21, 1
        %s311 = scalar_select %p310, %s21, 1
        %s312 = smul.addr %s311, 2
        %s313 = smul.addr %s312, 8
        %s314 = scalar_lea.vmem %s0, %s313
        %p315 = pneg %p42
        %p316 = pneg %p39
        %p317 = pneg %p63
        %p318 = pneg %p60
        %p319 = pneg %p84
        %p320 = pneg %p81
        %p321 = pneg %p105
        %p322 = pneg %p102
        %p323 = pneg %p126
        %p324 = pneg %p123
        %p325 = pneg %p147
        %p326 = pneg %p144
        %p327 = pneg %p168
        %p328 = pneg %p165
        %p329 = pneg %p189
        %p330 = pneg %p186
        %p331 = pneg %p210
        %p332 = pneg %p207
        %p333 = pneg %p236
        %p334 = pneg %p233
        %p335 = scmp.lt.s32.totalorder %s21, 1
        %s336 = scalar_select %p335, %s21, 1
        %s337 = smul.addr %s336, 8
        %s338 = smul.addr %s337, 8
        %s339 = scalar_lea.vmem %s9, %s338
        %p340 = scmp.lt.s32.totalorder %s21, 1
        %s341 = scalar_select %p340, %s21, 1
        %s342 = smul.addr %s341, 2
        %s343 = smul.addr %s342, 8
        %s344 = scalar_lea.vmem %s0, %s343
        %p345 = scmp.lt.s32.totalorder %s21, 1
        %s346 = scalar_select %p345, %s21, 1
        %s347 = smul.addr %s346, 8
        %s348 = smul.addr %s347, 8
        %s349 = scalar_lea.vmem %s9, %s348
        %v350 = vld [vmem:[%s344] sm:$0xff]
        %v351 = vld [vmem:[%s344 + $0x8] sm:$0xff]
        %v352 = vld [vmem:[%s1] sm:$0xff]
        %v353 = vld [vmem:[%s1 + $0x8] sm:$0xff]
        %v354 = vld [vmem:[%s1 + $0x10] sm:$0xff]
        %v355 = vld [vmem:[%s1 + $0x18] sm:$0xff]
        %vm356 = vcmask 130048
        %v358 = vsel %vm356, %v352, 0
        %v361 = vsel %vm356, %v353, 0
        %v364 = vsel %vm356, %v354, 0
        %v367 = vsel %vm356, %v355, 0
        %369 = vmatpush.msra.mxu0 0.0
        %370 = vmatpush.msra.mxu0 0.0
        %371 = vmatpush.msra.mxu0 0.0
        %372 = vmatpush.msra.mxu0 0.0
        %373 = vmatpush.msra.mxu0 0.0
        %374 = vmatpush.msra.mxu0 0.0
        %375 = vmatpush.msra.mxu0 0.0
        %376 = vmatpush.msra.mxu0 0.0
        %377 = vmatpush.msra.mxu0 0.0
        %378 = vmatpush.msra.mxu0 0.0
        %379 = vmatpush.msra.mxu0 0.0
        %380 = vmatpush.msra.mxu0 0.0
        %381 = vmatpush.msra.mxu0 0.0
        %382 = vmatpush.msra.mxu0 0.0
        %383 = vmatpush.msra.mxu0 %v351
        %384 = vmatpush.msra.mxu0 %v350
        %385 = vmatmul.f32.gmra.mxu0 %v358
        %v386 = vpop.f32.mrf.mxu0
        %v387 = vadd.f32 0.0, %v386
        %388 = vmatmul.f32.gmra.mxu0 %v361
        %v389 = vpop.f32.mrf.mxu0
        %v390 = vadd.f32 0.0, %v389
        %391 = vmatmul.f32.gmra.mxu0 %v364
        %v392 = vpop.f32.mrf.mxu0
        %v393 = vadd.f32 0.0, %v392
        %394 = vmatmul.f32.gmra.mxu0 %v367
        %v395 = vpop.f32.mrf.mxu0
        %v396 = vadd.f32 0.0, %v395
        %397 = vdwg.mxu0
        %v398 = vld [vmem:[%s2] sm:$0xff]
        %v399 = vld [vmem:[%s2 + $0x8] sm:$0xff]
        %v400 = vld [vmem:[%s2 + $0x10] sm:$0xff]
        %v401 = vld [vmem:[%s2 + $0x18] sm:$0xff]
        %v402 = vld [vmem:[%s2 + $0x20] sm:$0xff]
        %v403 = vld [vmem:[%s2 + $0x28] sm:$0xff]
        %v404 = vld [vmem:[%s2 + $0x30] sm:$0xff]
        %v405 = vld [vmem:[%s2 + $0x38] sm:$0xff]
        %s406 = scalar_lea.vmem %s1, 32
        %v407 = vld [vmem:[%s406] sm:$0xff]
        %v408 = vld [vmem:[%s406 + $0x8] sm:$0xff]
        %v409 = vld [vmem:[%s406 + $0x10] sm:$0xff]
        %v410 = vld [vmem:[%s406 + $0x18] sm:$0xff]
        %v412 = vsel %vm356, %v407, 0
        %v415 = vsel %vm356, %v408, 0
        %v418 = vsel %vm356, %v409, 0
        %v421 = vsel %vm356, %v410, 0
        %423 = vmatpush.msra.mxu0 0.0
        %424 = vmatpush.msra.mxu0 0.0
        %425 = vmatpush.msra.mxu0 0.0
        %426 = vmatpush.msra.mxu0 0.0
        %427 = vmatpush.msra.mxu0 0.0
        %428 = vmatpush.msra.mxu0 0.0
        %429 = vmatpush.msra.mxu0 0.0
        %430 = vmatpush.msra.mxu0 0.0
        %431 = vmatpush.msra.mxu0 0.0
        %432 = vmatpush.msra.mxu0 0.0
        %433 = vmatpush.msra.mxu0 0.0
        %434 = vmatpush.msra.mxu0 0.0
        %435 = vmatpush.msra.mxu0 0.0
        %436 = vmatpush.msra.mxu0 0.0
        %437 = vmatpush.msra.mxu0 %v351
        %438 = vmatpush.msra.mxu0 %v350
        %439 = vmatmul.f32.gmra.mxu0 %v412
        %v440 = vpop.f32.mrf.mxu0
        %v441 = vadd.f32 0.0, %v440
        %442 = vmatmul.f32.gmra.mxu0 %v415
        %v443 = vpop.f32.mrf.mxu0
        %v444 = vadd.f32 0.0, %v443
        %445 = vmatmul.f32.gmra.mxu0 %v418
        %v446 = vpop.f32.mrf.mxu0
        %v447 = vadd.f32 0.0, %v446
        %448 = vmatmul.f32.gmra.mxu0 %v421
        %v449 = vpop.f32.mrf.mxu0
        %v450 = vadd.f32 0.0, %v449
        %451 = vdwg.mxu0
        %s452 = scalar_lea.vmem %s2, 64
        %v453 = vld [vmem:[%s452] sm:$0xff]
        %v454 = vld [vmem:[%s452 + $0x8] sm:$0xff]
        %v455 = vld [vmem:[%s452 + $0x10] sm:$0xff]
        %v456 = vld [vmem:[%s452 + $0x18] sm:$0xff]
        %v457 = vld [vmem:[%s452 + $0x20] sm:$0xff]
        %v458 = vld [vmem:[%s452 + $0x28] sm:$0xff]
        %v459 = vld [vmem:[%s452 + $0x30] sm:$0xff]
        %v460 = vld [vmem:[%s452 + $0x38] sm:$0xff]
        %vm461 = vcmask 523264
        %v463 = vsel %vm461, %v441, 0
        %v466 = vsel %vm461, %v444, 0
        %v469 = vsel %vm461, %v447, 0
        %v472 = vsel %vm461, %v450, 0
        %474 = vmatpush.msra.mxu0 0.0
        %475 = vmatpush.msra.mxu0 0.0
        %476 = vmatpush.msra.mxu0 0.0
        %477 = vmatpush.msra.mxu0 0.0
        %478 = vmatpush.msra.mxu0 0.0
        %479 = vmatpush.msra.mxu0 0.0
        %480 = vmatpush.msra.mxu0 0.0
        %481 = vmatpush.msra.mxu0 0.0
        %482 = vmatpush.msra.mxu0 %v460
        %483 = vmatpush.msra.mxu0 %v459
        %484 = vmatpush.msra.mxu0 %v458
        %485 = vmatpush.msra.mxu0 %v457
        %486 = vmatpush.msra.mxu0 %v456
        %487 = vmatpush.msra.mxu0 %v455
        %488 = vmatpush.msra.mxu0 %v454
        %489 = vmatpush.msra.mxu0 %v453
        %490 = vmatmul.f32.gmra.mxu0 %v463
        %v491 = vpop.f32.mrf.mxu0
        %v492 = vadd.f32 0.0, %v491
        %493 = vmatmul.f32.gmra.mxu0 %v466
        %v494 = vpop.f32.mrf.mxu0
        %v495 = vadd.f32 0.0, %v494
        %496 = vmatmul.f32.gmra.mxu0 %v469
        %v497 = vpop.f32.mrf.mxu0
        %v498 = vadd.f32 0.0, %v497
        %499 = vmatmul.f32.gmra.mxu0 %v472
        %v500 = vpop.f32.mrf.mxu0
        %v501 = vadd.f32 0.0, %v500
        %502 = vdwg.mxu0
        %v504 = vsel %vm461, %v387, 0
        %v507 = vsel %vm461, %v390, 0
        %v510 = vsel %vm461, %v393, 0
        %v513 = vsel %vm461, %v396, 0
        %515 = vmatpush.msra.mxu0 0.0
        %516 = vmatpush.msra.mxu0 0.0
        %517 = vmatpush.msra.mxu0 0.0
        %518 = vmatpush.msra.mxu0 0.0
        %519 = vmatpush.msra.mxu0 0.0
        %520 = vmatpush.msra.mxu0 0.0
        %521 = vmatpush.msra.mxu0 0.0
        %522 = vmatpush.msra.mxu0 0.0
        %523 = vmatpush.msra.mxu0 %v405
        %524 = vmatpush.msra.mxu0 %v404
        %525 = vmatpush.msra.mxu0 %v403
        %526 = vmatpush.msra.mxu0 %v402
        %527 = vmatpush.msra.mxu0 %v401
        %528 = vmatpush.msra.mxu0 %v400
        %529 = vmatpush.msra.mxu0 %v399
        %530 = vmatpush.msra.mxu0 %v398
        %531 = vmatmul.f32.gmra.mxu0 %v504
        %v532 = vpop.f32.mrf.mxu0
        %v533 = vadd.f32 %v492, %v532
        %534 = vmatmul.f32.gmra.mxu0 %v507
        %v535 = vpop.f32.mrf.mxu0
        %v536 = vadd.f32 %v495, %v535
        %537 = vmatmul.f32.gmra.mxu0 %v510
        %v538 = vpop.f32.mrf.mxu0
        %v539 = vadd.f32 %v498, %v538
        %540 = vmatmul.f32.gmra.mxu0 %v513
        %v541 = vpop.f32.mrf.mxu0
        %v542 = vadd.f32 %v501, %v541
        %543 = vdwg.mxu0
        %s544 = scalar_lea.vmem %s1, 64
        %v545 = vld [vmem:[%s544] sm:$0xff]
        %v546 = vld [vmem:[%s544 + $0x8] sm:$0xff]
        %v547 = vld [vmem:[%s544 + $0x10] sm:$0xff]
        %v548 = vld [vmem:[%s544 + $0x18] sm:$0xff]
        %v550 = vsel %vm356, %v545, 0
        %v553 = vsel %vm356, %v546, 0
        %v556 = vsel %vm356, %v547, 0
        %v559 = vsel %vm356, %v548, 0
        %561 = vmatpush.msra.mxu0 0.0
        %562 = vmatpush.msra.mxu0 0.0
        %563 = vmatpush.msra.mxu0 0.0
        %564 = vmatpush.msra.mxu0 0.0
        %565 = vmatpush.msra.mxu0 0.0
        %566 = vmatpush.msra.mxu0 0.0
        %567 = vmatpush.msra.mxu0 0.0
        %568 = vmatpush.msra.mxu0 0.0
        %569 = vmatpush.msra.mxu0 0.0
        %570 = vmatpush.msra.mxu0 0.0
        %571 = vmatpush.msra.mxu0 0.0
        %572 = vmatpush.msra.mxu0 0.0
        %573 = vmatpush.msra.mxu0 0.0
        %574 = vmatpush.msra.mxu0 0.0
        %575 = vmatpush.msra.mxu0 %v351
        %576 = vmatpush.msra.mxu0 %v350
        %577 = vmatmul.f32.gmra.mxu0 %v550
        %v578 = vpop.f32.mrf.mxu0
        %v579 = vadd.f32 0.0, %v578
        %580 = vmatmul.f32.gmra.mxu0 %v553
        %v581 = vpop.f32.mrf.mxu0
        %v582 = vadd.f32 0.0, %v581
        %583 = vmatmul.f32.gmra.mxu0 %v556
        %v584 = vpop.f32.mrf.mxu0
        %v585 = vadd.f32 0.0, %v584
        %586 = vmatmul.f32.gmra.mxu0 %v559
        %v587 = vpop.f32.mrf.mxu0
        %v588 = vadd.f32 0.0, %v587
        %589 = vdwg.mxu0
        %s590 = scalar_lea.vmem %s2, 128
        %v591 = vld [vmem:[%s590] sm:$0xff]
        %v592 = vld [vmem:[%s590 + $0x8] sm:$0xff]
        %v593 = vld [vmem:[%s590 + $0x10] sm:$0xff]
        %v594 = vld [vmem:[%s590 + $0x18] sm:$0xff]
        %v595 = vld [vmem:[%s590 + $0x20] sm:$0xff]
        %v596 = vld [vmem:[%s590 + $0x28] sm:$0xff]
        %v597 = vld [vmem:[%s590 + $0x30] sm:$0xff]
        %v598 = vld [vmem:[%s590 + $0x38] sm:$0xff]
        %v600 = vsel %vm461, %v579, 0
        %v603 = vsel %vm461, %v582, 0
        %v606 = vsel %vm461, %v585, 0
        %v609 = vsel %vm461, %v588, 0
        %611 = vmatpush.msra.mxu0 0.0
        %612 = vmatpush.msra.mxu0 0.0
        %613 = vmatpush.msra.mxu0 0.0
        %614 = vmatpush.msra.mxu0 0.0
        %615 = vmatpush.msra.mxu0 0.0
        %616 = vmatpush.msra.mxu0 0.0
        %617 = vmatpush.msra.mxu0 0.0
        %618 = vmatpush.msra.mxu0 0.0
        %619 = vmatpush.msra.mxu0 %v598
        %620 = vmatpush.msra.mxu0 %v597
        %621 = vmatpush.msra.mxu0 %v596
        %622 = vmatpush.msra.mxu0 %v595
        %623 = vmatpush.msra.mxu0 %v594
        %624 = vmatpush.msra.mxu0 %v593
        %625 = vmatpush.msra.mxu0 %v592
        %626 = vmatpush.msra.mxu0 %v591
        %627 = vmatmul.f32.gmra.mxu0 %v600
        %v628 = vpop.f32.mrf.mxu0
        %v629 = vadd.f32 0.0, %v628
        %630 = vmatmul.f32.gmra.mxu0 %v603
        %v631 = vpop.f32.mrf.mxu0
        %v632 = vadd.f32 0.0, %v631
        %633 = vmatmul.f32.gmra.mxu0 %v606
        %v634 = vpop.f32.mrf.mxu0
        %v635 = vadd.f32 0.0, %v634
        %636 = vmatmul.f32.gmra.mxu0 %v609
        %v637 = vpop.f32.mrf.mxu0
        %v638 = vadd.f32 0.0, %v637
        %639 = vdwg.mxu0
        %v640 = vadd.f32 %v533, %v629
        %v641 = vadd.f32 %v536, %v632
        %v642 = vadd.f32 %v539, %v635
        %v643 = vadd.f32 %v542, %v638
        %v644 = vld [vmem:[%s3] sm:$0x1]
        %v646 = vperm.slane %v644, 0
        %v648 = vmul.f32 %v640, %v646
        %v649 = vmul.f32 %v641, %v646
        %v650 = vmul.f32 %v642, %v646
        %v651 = vmul.f32 %v643, %v646
        %v652 = vld [vmem:[%s4] sm:$0x1]
        %v654 = vperm.slane %v652, 0
        %v656 = vadd.f32 %v648, %v654
        %v657 = vadd.f32 %v649, %v654
        %v658 = vadd.f32 %v650, %v654
        %v659 = vadd.f32 %v651, %v654
        %v660 = vmax.f32 %v656, 0.0
        %v661 = vmax.f32 %v657, 0.0
        %v662 = vmax.f32 %v658, 0.0
        %v663 = vmax.f32 %v659, 0.0
        %v664 = vld [vmem:[%s5] sm:$0xff]
        %v665 = vld [vmem:[%s5 + $0x8] sm:$0xff]
        %v666 = vld [vmem:[%s5 + $0x10] sm:$0xff]
        %v667 = vld [vmem:[%s5 + $0x18] sm:$0xff]
        %vm668 = vcmask 261120
        %v670 = vsel %vm668, %v664, 0
        %v673 = vsel %vm668, %v665, 0
        %v676 = vsel %vm668, %v666, 0
        %v679 = vsel %vm668, %v667, 0
        %681 = vmatpush.msra.mxu0 0.0
        %682 = vmatpush.msra.mxu0 0.0
        %683 = vmatpush.msra.mxu0 0.0
        %684 = vmatpush.msra.mxu0 0.0
        %685 = vmatpush.msra.mxu0 0.0
        %686 = vmatpush.msra.mxu0 0.0
        %687 = vmatpush.msra.mxu0 0.0
        %688 = vmatpush.msra.mxu0 0.0
        %689 = vmatpush.msra.mxu0 0.0
        %690 = vmatpush.msra.mxu0 0.0
        %691 = vmatpush.msra.mxu0 0.0
        %692 = vmatpush.msra.mxu0 0.0
        %693 = vmatpush.msra.mxu0 %v663
        %694 = vmatpush.msra.mxu0 %v662
        %695 = vmatpush.msra.mxu0 %v661
        %696 = vmatpush.msra.mxu0 %v660
        %697 = vmatmul.f32.gmra.mxu0 %v670
        %v698 = vpop.f32.mrf.mxu0
        %v699 = vadd.f32 0.0, %v698
        %700 = vmatmul.f32.gmra.mxu0 %v673
        %v701 = vpop.f32.mrf.mxu0
        %v702 = vadd.f32 0.0, %v701
        %703 = vmatmul.f32.gmra.mxu0 %v676
        %v704 = vpop.f32.mrf.mxu0
        %v705 = vadd.f32 0.0, %v704
        %706 = vmatmul.f32.gmra.mxu0 %v679
        %v707 = vpop.f32.mrf.mxu0
        %v708 = vadd.f32 0.0, %v707
        %709 = vdwg.mxu0
        %v710 = vld [vmem:[#allocation2] sm:$0xff]
        %v711 = vld [vmem:[#allocation2 + $0x8] sm:$0xff]
        %v712 = vld [vmem:[#allocation2 + $0x10] sm:$0xff]
        %v713 = vld [vmem:[#allocation2 + $0x18] sm:$0xff]
        %v714 = vld [vmem:[#allocation2 + $0x20] sm:$0xff]
        %v715 = vld [vmem:[#allocation2 + $0x28] sm:$0xff]
        %v716 = vld [vmem:[#allocation2 + $0x30] sm:$0xff]
        %v717 = vld [vmem:[#allocation2 + $0x38] sm:$0xff]
        %v718 = vld [vmem:[#allocation2 + $0x40] sm:$0xff]
        %v719 = vld [vmem:[#allocation2 + $0x48] sm:$0xff]
        %v720 = vld [vmem:[#allocation2 + $0x50] sm:$0xff]
        %v721 = vld [vmem:[#allocation2 + $0x58] sm:$0xff]
        %v722 = vld [vmem:[#allocation2 + $0x60] sm:$0xff]
        %v723 = vld [vmem:[#allocation2 + $0x68] sm:$0xff]
        %v724 = vld [vmem:[#allocation2 + $0x70] sm:$0xff]
        %v725 = vld [vmem:[#allocation2 + $0x78] sm:$0xff]
        %v726 = vld [vmem:[#allocation2 + $0x80] sm:$0xff]
        %v727 = vld [vmem:[#allocation2 + $0x88] sm:$0xff]
        %v728 = vld [vmem:[#allocation2 + $0x90] sm:$0xff]
        %v729 = vld [vmem:[#allocation2 + $0x98] sm:$0xff]
        %v730 = vld [vmem:[#allocation2 + $0xa0] sm:$0xff]
        %v731 = vld [vmem:[#allocation2 + $0xa8] sm:$0xff]
        %v732 = vld [vmem:[#allocation2 + $0xb0] sm:$0xff]
        %v733 = vld [vmem:[#allocation2 + $0xb8] sm:$0xff]
        %v734 = vld [vmem:[#allocation2 + $0xc0] sm:$0xff]
        %v735 = vld [vmem:[#allocation2 + $0xc8] sm:$0xff]
        %v736 = vld [vmem:[#allocation2 + $0xd0] sm:$0xff]
        %v737 = vld [vmem:[#allocation2 + $0xd8] sm:$0xff]
        %v738 = vld [vmem:[#allocation2 + $0xe0] sm:$0xff]
        %v739 = vld [vmem:[#allocation2 + $0xe8] sm:$0xff]
        %v740 = vld [vmem:[#allocation2 + $0xf0] sm:$0xff]
        %v741 = vld [vmem:[#allocation2 + $0xf8] sm:$0xff]
        %s742 = scalar_lea.vmem %s5, 32
        %v743 = vld [vmem:[%s742] sm:$0xff]
        %v744 = vld [vmem:[%s742 + $0x8] sm:$0xff]
        %v745 = vld [vmem:[%s742 + $0x10] sm:$0xff]
        %v746 = vld [vmem:[%s742 + $0x18] sm:$0xff]
        %v748 = vsel %vm668, %v743, 0
        %v751 = vsel %vm668, %v744, 0
        %v754 = vsel %vm668, %v745, 0
        %v757 = vsel %vm668, %v746, 0
        %759 = vmatpush.msra.mxu0 0.0
        %760 = vmatpush.msra.mxu0 0.0
        %761 = vmatpush.msra.mxu0 0.0
        %762 = vmatpush.msra.mxu0 0.0
        %763 = vmatpush.msra.mxu0 0.0
        %764 = vmatpush.msra.mxu0 0.0
        %765 = vmatpush.msra.mxu0 0.0
        %766 = vmatpush.msra.mxu0 0.0
        %767 = vmatpush.msra.mxu0 0.0
        %768 = vmatpush.msra.mxu0 0.0
        %769 = vmatpush.msra.mxu0 0.0
        %770 = vmatpush.msra.mxu0 0.0
        %771 = vmatpush.msra.mxu0 %v663
        %772 = vmatpush.msra.mxu0 %v662
        %773 = vmatpush.msra.mxu0 %v661
        %774 = vmatpush.msra.mxu0 %v660
        %775 = vmatmul.f32.gmra.mxu0 %v748
        %v776 = vpop.f32.mrf.mxu0
        %v777 = vadd.f32 0.0, %v776
        %778 = vmatmul.f32.gmra.mxu0 %v751
        %v779 = vpop.f32.mrf.mxu0
        %v780 = vadd.f32 0.0, %v779
        %781 = vmatmul.f32.gmra.mxu0 %v754
        %v782 = vpop.f32.mrf.mxu0
        %v783 = vadd.f32 0.0, %v782
        %784 = vmatmul.f32.gmra.mxu0 %v757
        %v785 = vpop.f32.mrf.mxu0
        %v786 = vadd.f32 0.0, %v785
        %787 = vdwg.mxu0
        %s788 = scalar_lea.vmem [#allocation2], 256
        %v789 = vld [vmem:[%s788] sm:$0xff]
        %v790 = vld [vmem:[%s788 + $0x8] sm:$0xff]
        %v791 = vld [vmem:[%s788 + $0x10] sm:$0xff]
        %v792 = vld [vmem:[%s788 + $0x18] sm:$0xff]
        %v793 = vld [vmem:[%s788 + $0x20] sm:$0xff]
        %v794 = vld [vmem:[%s788 + $0x28] sm:$0xff]
        %v795 = vld [vmem:[%s788 + $0x30] sm:$0xff]
        %v796 = vld [vmem:[%s788 + $0x38] sm:$0xff]
        %v797 = vld [vmem:[%s788 + $0x40] sm:$0xff]
        %v798 = vld [vmem:[%s788 + $0x48] sm:$0xff]
        %v799 = vld [vmem:[%s788 + $0x50] sm:$0xff]
        %v800 = vld [vmem:[%s788 + $0x58] sm:$0xff]
        %v801 = vld [vmem:[%s788 + $0x60] sm:$0xff]
        %v802 = vld [vmem:[%s788 + $0x68] sm:$0xff]
        %v803 = vld [vmem:[%s788 + $0x70] sm:$0xff]
        %v804 = vld [vmem:[%s788 + $0x78] sm:$0xff]
        %v805 = vld [vmem:[%s788 + $0x80] sm:$0xff]
        %v806 = vld [vmem:[%s788 + $0x88] sm:$0xff]
        %v807 = vld [vmem:[%s788 + $0x90] sm:$0xff]
        %v808 = vld [vmem:[%s788 + $0x98] sm:$0xff]
        %v809 = vld [vmem:[%s788 + $0xa0] sm:$0xff]
        %v810 = vld [vmem:[%s788 + $0xa8] sm:$0xff]
        %v811 = vld [vmem:[%s788 + $0xb0] sm:$0xff]
        %v812 = vld [vmem:[%s788 + $0xb8] sm:$0xff]
        %v813 = vld [vmem:[%s788 + $0xc0] sm:$0xff]
        %v814 = vld [vmem:[%s788 + $0xc8] sm:$0xff]
        %v815 = vld [vmem:[%s788 + $0xd0] sm:$0xff]
        %v816 = vld [vmem:[%s788 + $0xd8] sm:$0xff]
        %v817 = vld [vmem:[%s788 + $0xe0] sm:$0xff]
        %v818 = vld [vmem:[%s788 + $0xe8] sm:$0xff]
        %v819 = vld [vmem:[%s788 + $0xf0] sm:$0xff]
        %v820 = vld [vmem:[%s788 + $0xf8] sm:$0xff]
        %821 = vmatpush.msra.mxu0 %v819
        %822 = vmatpush.msra.mxu0 %v817
        %823 = vmatpush.msra.mxu0 %v815
        %824 = vmatpush.msra.mxu0 %v813
        %825 = vmatpush.msra.mxu0 %v811
        %826 = vmatpush.msra.mxu0 %v809
        %827 = vmatpush.msra.mxu0 %v807
        %828 = vmatpush.msra.mxu0 %v805
        %829 = vmatpush.msra.mxu0 %v803
        %830 = vmatpush.msra.mxu0 %v801
        %831 = vmatpush.msra.mxu0 %v799
        %832 = vmatpush.msra.mxu0 %v797
        %833 = vmatpush.msra.mxu0 %v795
        %834 = vmatpush.msra.mxu0 %v793
        %835 = vmatpush.msra.mxu0 %v791
        %836 = vmatpush.msra.mxu0 %v789
        %837 = vmatmul.f32.gmra.mxu0 %v777
        %v838 = vpop.f32.mrf.mxu0
        %v839 = vadd.f32 0.0, %v838
        %840 = vmatmul.f32.gmra.mxu0 %v780
        %v841 = vpop.f32.mrf.mxu0
        %v842 = vadd.f32 0.0, %v841
        %843 = vmatmul.f32.gmra.mxu0 %v783
        %v844 = vpop.f32.mrf.mxu0
        %v845 = vadd.f32 0.0, %v844
        %846 = vmatmul.f32.gmra.mxu0 %v786
        %v847 = vpop.f32.mrf.mxu0
        %v848 = vadd.f32 0.0, %v847
        %849 = vdwg.mxu0
        %850 = vmatpush.msra.mxu0 %v820
        %851 = vmatpush.msra.mxu0 %v818
        %852 = vmatpush.msra.mxu0 %v816
        %853 = vmatpush.msra.mxu0 %v814
        %854 = vmatpush.msra.mxu0 %v812
        %855 = vmatpush.msra.mxu0 %v810
        %856 = vmatpush.msra.mxu0 %v808
        %857 = vmatpush.msra.mxu0 %v806
        %858 = vmatpush.msra.mxu0 %v804
        %859 = vmatpush.msra.mxu0 %v802
        %860 = vmatpush.msra.mxu0 %v800
        %861 = vmatpush.msra.mxu0 %v798
        %862 = vmatpush.msra.mxu0 %v796
        %863 = vmatpush.msra.mxu0 %v794
        %864 = vmatpush.msra.mxu0 %v792
        %865 = vmatpush.msra.mxu0 %v790
        %866 = vmatmul.f32.gmra.mxu0 %v777
        %v867 = vpop.f32.mrf.mxu0
        %v868 = vadd.f32 0.0, %v867
        %869 = vmatmul.f32.gmra.mxu0 %v780
        %v870 = vpop.f32.mrf.mxu0
        %v871 = vadd.f32 0.0, %v870
        %872 = vmatmul.f32.gmra.mxu0 %v783
        %v873 = vpop.f32.mrf.mxu0
        %v874 = vadd.f32 0.0, %v873
        %875 = vmatmul.f32.gmra.mxu0 %v786
        %v876 = vpop.f32.mrf.mxu0
        %v877 = vadd.f32 0.0, %v876
        %878 = vdwg.mxu0
        %879 = vmatpush.msra.mxu0 %v740
        %880 = vmatpush.msra.mxu0 %v738
        %881 = vmatpush.msra.mxu0 %v736
        %882 = vmatpush.msra.mxu0 %v734
        %883 = vmatpush.msra.mxu0 %v732
        %884 = vmatpush.msra.mxu0 %v730
        %885 = vmatpush.msra.mxu0 %v728
        %886 = vmatpush.msra.mxu0 %v726
        %887 = vmatpush.msra.mxu0 %v724
        %888 = vmatpush.msra.mxu0 %v722
        %889 = vmatpush.msra.mxu0 %v720
        %890 = vmatpush.msra.mxu0 %v718
        %891 = vmatpush.msra.mxu0 %v716
        %892 = vmatpush.msra.mxu0 %v714
        %893 = vmatpush.msra.mxu0 %v712
        %894 = vmatpush.msra.mxu0 %v710
        %895 = vmatmul.f32.gmra.mxu0 %v699
        %v896 = vpop.f32.mrf.mxu0
        %v897 = vadd.f32 %v839, %v896
        %898 = vmatmul.f32.gmra.mxu0 %v702
        %v899 = vpop.f32.mrf.mxu0
        %v900 = vadd.f32 %v842, %v899
        %901 = vmatmul.f32.gmra.mxu0 %v705
        %v902 = vpop.f32.mrf.mxu0
        %v903 = vadd.f32 %v845, %v902
        %904 = vmatmul.f32.gmra.mxu0 %v708
        %v905 = vpop.f32.mrf.mxu0
        %v906 = vadd.f32 %v848, %v905
        %907 = vdwg.mxu0
        %908 = vmatpush.msra.mxu0 %v741
        %909 = vmatpush.msra.mxu0 %v739
        %910 = vmatpush.msra.mxu0 %v737
        %911 = vmatpush.msra.mxu0 %v735
        %912 = vmatpush.msra.mxu0 %v733
        %913 = vmatpush.msra.mxu0 %v731
        %914 = vmatpush.msra.mxu0 %v729
        %915 = vmatpush.msra.mxu0 %v727
        %916 = vmatpush.msra.mxu0 %v725
        %917 = vmatpush.msra.mxu0 %v723
        %918 = vmatpush.msra.mxu0 %v721
        %919 = vmatpush.msra.mxu0 %v719
        %920 = vmatpush.msra.mxu0 %v717
        %921 = vmatpush.msra.mxu0 %v715
        %922 = vmatpush.msra.mxu0 %v713
        %923 = vmatpush.msra.mxu0 %v711
        %924 = vmatmul.f32.gmra.mxu0 %v699
        %v925 = vpop.f32.mrf.mxu0
        %v926 = vadd.f32 %v868, %v925
        %927 = vmatmul.f32.gmra.mxu0 %v702
        %v928 = vpop.f32.mrf.mxu0
        %v929 = vadd.f32 %v871, %v928
        %930 = vmatmul.f32.gmra.mxu0 %v705
        %v931 = vpop.f32.mrf.mxu0
        %v932 = vadd.f32 %v874, %v931
        %933 = vmatmul.f32.gmra.mxu0 %v708
        %v934 = vpop.f32.mrf.mxu0
        %v935 = vadd.f32 %v877, %v934
        %936 = vdwg.mxu0
        %s937 = scalar_lea.vmem %s5, 64
        %v938 = vld [vmem:[%s937] sm:$0xff]
        %v939 = vld [vmem:[%s937 + $0x8] sm:$0xff]
        %v940 = vld [vmem:[%s937 + $0x10] sm:$0xff]
        %v941 = vld [vmem:[%s937 + $0x18] sm:$0xff]
        %v943 = vsel %vm668, %v938, 0
        %v946 = vsel %vm668, %v939, 0
        %v949 = vsel %vm668, %v940, 0
        %v952 = vsel %vm668, %v941, 0
        %954 = vmatpush.msra.mxu0 0.0
        %955 = vmatpush.msra.mxu0 0.0
        %956 = vmatpush.msra.mxu0 0.0
        %957 = vmatpush.msra.mxu0 0.0
        %958 = vmatpush.msra.mxu0 0.0
        %959 = vmatpush.msra.mxu0 0.0
        %960 = vmatpush.msra.mxu0 0.0
        %961 = vmatpush.msra.mxu0 0.0
        %962 = vmatpush.msra.mxu0 0.0
        %963 = vmatpush.msra.mxu0 0.0
        %964 = vmatpush.msra.mxu0 0.0
        %965 = vmatpush.msra.mxu0 0.0
        %966 = vmatpush.msra.mxu0 %v663
        %967 = vmatpush.msra.mxu0 %v662
        %968 = vmatpush.msra.mxu0 %v661
        %969 = vmatpush.msra.mxu0 %v660
        %970 = vmatmul.f32.gmra.mxu0 %v943
        %v971 = vpop.f32.mrf.mxu0
        %v972 = vadd.f32 0.0, %v971
        %973 = vmatmul.f32.gmra.mxu0 %v946
        %v974 = vpop.f32.mrf.mxu0
        %v975 = vadd.f32 0.0, %v974
        %976 = vmatmul.f32.gmra.mxu0 %v949
        %v977 = vpop.f32.mrf.mxu0
        %v978 = vadd.f32 0.0, %v977
        %979 = vmatmul.f32.gmra.mxu0 %v952
        %v980 = vpop.f32.mrf.mxu0
        %v981 = vadd.f32 0.0, %v980
        %982 = vdwg.mxu0
        %s983 = scalar_lea.vmem [#allocation2], 512
        %v984 = vld [vmem:[%s983] sm:$0xff]
        %v985 = vld [vmem:[%s983 + $0x8] sm:$0xff]
        %v986 = vld [vmem:[%s983 + $0x10] sm:$0xff]
        %v987 = vld [vmem:[%s983 + $0x18] sm:$0xff]
        %v988 = vld [vmem:[%s983 + $0x20] sm:$0xff]
        %v989 = vld [vmem:[%s983 + $0x28] sm:$0xff]
        %v990 = vld [vmem:[%s983 + $0x30] sm:$0xff]
        %v991 = vld [vmem:[%s983 + $0x38] sm:$0xff]
        %v992 = vld [vmem:[%s983 + $0x40] sm:$0xff]
        %v993 = vld [vmem:[%s983 + $0x48] sm:$0xff]
        %v994 = vld [vmem:[%s983 + $0x50] sm:$0xff]
        %v995 = vld [vmem:[%s983 + $0x58] sm:$0xff]
        %v996 = vld [vmem:[%s983 + $0x60] sm:$0xff]
        %v997 = vld [vmem:[%s983 + $0x68] sm:$0xff]
        %v998 = vld [vmem:[%s983 + $0x70] sm:$0xff]
        %v999 = vld [vmem:[%s983 + $0x78] sm:$0xff]
        %v1000 = vld [vmem:[%s983 + $0x80] sm:$0xff]
        %v1001 = vld [vmem:[%s983 + $0x88] sm:$0xff]
        %v1002 = vld [vmem:[%s983 + $0x90] sm:$0xff]
        %v1003 = vld [vmem:[%s983 + $0x98] sm:$0xff]
        %v1004 = vld [vmem:[%s983 + $0xa0] sm:$0xff]
        %v1005 = vld [vmem:[%s983 + $0xa8] sm:$0xff]
        %v1006 = vld [vmem:[%s983 + $0xb0] sm:$0xff]
        %v1007 = vld [vmem:[%s983 + $0xb8] sm:$0xff]
        %v1008 = vld [vmem:[%s983 + $0xc0] sm:$0xff]
        %v1009 = vld [vmem:[%s983 + $0xc8] sm:$0xff]
        %v1010 = vld [vmem:[%s983 + $0xd0] sm:$0xff]
        %v1011 = vld [vmem:[%s983 + $0xd8] sm:$0xff]
        %v1012 = vld [vmem:[%s983 + $0xe0] sm:$0xff]
        %v1013 = vld [vmem:[%s983 + $0xe8] sm:$0xff]
        %v1014 = vld [vmem:[%s983 + $0xf0] sm:$0xff]
        %v1015 = vld [vmem:[%s983 + $0xf8] sm:$0xff]
        %1016 = vmatpush.msra.mxu0 %v1014
        %1017 = vmatpush.msra.mxu0 %v1012
        %1018 = vmatpush.msra.mxu0 %v1010
        %1019 = vmatpush.msra.mxu0 %v1008
        %1020 = vmatpush.msra.mxu0 %v1006
        %1021 = vmatpush.msra.mxu0 %v1004
        %1022 = vmatpush.msra.mxu0 %v1002
        %1023 = vmatpush.msra.mxu0 %v1000
        %1024 = vmatpush.msra.mxu0 %v998
        %1025 = vmatpush.msra.mxu0 %v996
        %1026 = vmatpush.msra.mxu0 %v994
        %1027 = vmatpush.msra.mxu0 %v992
        %1028 = vmatpush.msra.mxu0 %v990
        %1029 = vmatpush.msra.mxu0 %v988
        %1030 = vmatpush.msra.mxu0 %v986
        %1031 = vmatpush.msra.mxu0 %v984
        %1032 = vmatmul.f32.gmra.mxu0 %v972
        %v1033 = vpop.f32.mrf.mxu0
        %v1034 = vadd.f32 0.0, %v1033
        %1035 = vmatmul.f32.gmra.mxu0 %v975
        %v1036 = vpop.f32.mrf.mxu0
        %v1037 = vadd.f32 0.0, %v1036
        %1038 = vmatmul.f32.gmra.mxu0 %v978
        %v1039 = vpop.f32.mrf.mxu0
        %v1040 = vadd.f32 0.0, %v1039
        %1041 = vmatmul.f32.gmra.mxu0 %v981
        %v1042 = vpop.f32.mrf.mxu0
        %v1043 = vadd.f32 0.0, %v1042
        %1044 = vdwg.mxu0
        %1045 = vmatpush.msra.mxu0 %v1015
        %1046 = vmatpush.msra.mxu0 %v1013
        %1047 = vmatpush.msra.mxu0 %v1011
        %1048 = vmatpush.msra.mxu0 %v1009
        %1049 = vmatpush.msra.mxu0 %v1007
        %1050 = vmatpush.msra.mxu0 %v1005
        %1051 = vmatpush.msra.mxu0 %v1003
        %1052 = vmatpush.msra.mxu0 %v1001
        %1053 = vmatpush.msra.mxu0 %v999
        %1054 = vmatpush.msra.mxu0 %v997
        %1055 = vmatpush.msra.mxu0 %v995
        %1056 = vmatpush.msra.mxu0 %v993
        %1057 = vmatpush.msra.mxu0 %v991
        %1058 = vmatpush.msra.mxu0 %v989
        %1059 = vmatpush.msra.mxu0 %v987
        %1060 = vmatpush.msra.mxu0 %v985
        %1061 = vmatmul.f32.gmra.mxu0 %v972
        %v1062 = vpop.f32.mrf.mxu0
        %v1063 = vadd.f32 0.0, %v1062
        %1064 = vmatmul.f32.gmra.mxu0 %v975
        %v1065 = vpop.f32.mrf.mxu0
        %v1066 = vadd.f32 0.0, %v1065
        %1067 = vmatmul.f32.gmra.mxu0 %v978
        %v1068 = vpop.f32.mrf.mxu0
        %v1069 = vadd.f32 0.0, %v1068
        %1070 = vmatmul.f32.gmra.mxu0 %v981
        %v1071 = vpop.f32.mrf.mxu0
        %v1072 = vadd.f32 0.0, %v1071
        %1073 = vdwg.mxu0
        %v1074 = vadd.f32 %v897, %v1034
        %v1075 = vadd.f32 %v926, %v1063
        %v1076 = vadd.f32 %v900, %v1037
        %v1077 = vadd.f32 %v929, %v1066
        %v1078 = vadd.f32 %v903, %v1040
        %v1079 = vadd.f32 %v932, %v1069
        %v1080 = vadd.f32 %v906, %v1043
        %v1081 = vadd.f32 %v935, %v1072
        %v1082 = vld [vmem:[%s7] sm:$0x3]
        %v1084 = vperm.slane %v1082, 0
        %v1085 = vperm.slane %v1082, 1
        %v1088 = vmul.f32 %v1074, %v1084
        %v1089 = vmul.f32 %v1075, %v1085
        %v1090 = vmul.f32 %v1076, %v1084
        %v1091 = vmul.f32 %v1077, %v1085
        %v1092 = vmul.f32 %v1078, %v1084
        %v1093 = vmul.f32 %v1079, %v1085
        %v1094 = vmul.f32 %v1080, %v1084
        %v1095 = vmul.f32 %v1081, %v1085
        %v1096 = vld [vmem:[%s8] sm:$0x3]
        %v1098 = vperm.slane %v1096, 0
        %v1099 = vperm.slane %v1096, 1
        %v1102 = vadd.f32 %v1088, %v1098
        %v1103 = vadd.f32 %v1089, %v1099
        %v1104 = vadd.f32 %v1090, %v1098
        %v1105 = vadd.f32 %v1091, %v1099
        %v1106 = vadd.f32 %v1092, %v1098
        %v1107 = vadd.f32 %v1093, %v1099
        %v1108 = vadd.f32 %v1094, %v1098
        %v1109 = vadd.f32 %v1095, %v1099
        %v1110 = vmax.f32 %v1102, 0.0
        %v1111 = vmax.f32 %v1103, 0.0
        %v1112 = vmax.f32 %v1104, 0.0
        %v1113 = vmax.f32 %v1105, 0.0
        %v1114 = vmax.f32 %v1106, 0.0
        %v1115 = vmax.f32 %v1107, 0.0
        %v1116 = vmax.f32 %v1108, 0.0
        %v1117 = vmax.f32 %v1109, 0.0
        %1118 = vst [vmem:[%s349] sm:$0xff] %v1110
        %1119 = vst [vmem:[%s349 + $0x8] sm:$0xff] %v1111
        %1120 = vst [vmem:[%s349 + $0x10] sm:$0xff] %v1112
        %1121 = vst [vmem:[%s349 + $0x18] sm:$0xff] %v1113
        %1122 = vst [vmem:[%s349 + $0x20] sm:$0xff] %v1114
        %1123 = vst [vmem:[%s349 + $0x28] sm:$0xff] %v1115
        %1124 = vst [vmem:[%s349 + $0x30] sm:$0xff] %v1116
        %1125 = vst [vmem:[%s349 + $0x38] sm:$0xff] %v1117
        %p1126 = scmp.lt.s32.totalorder %s21, 1
        %s1127 = scalar_select %p1126, %s21, 1
        %s1128 = smul.addr %s1127, 8
        %s1129 = smul.addr %s1128, 8
        %s1130 = scalar_lea.vmem %s9, %s1129
        // Predicated region
        $region61: #{segnet_up2_forward.1} parent=55 // pred_check
          %p1131 = pneg %p233
        $region62: #{segnet_up2_forward.1} parent=55 // pred_check_branch
          %1133 = sbr.rel (%p1131) target = $region64
        $region63: #{segnet_up2_forward.1} parent=55 // pred_region
          _
        $region64: #{segnet_up2_forward.1} parent=55 // pred_fallthru
          _
      $region56: #{segnet_up2_forward.1} parent=5 // pred_fallthru
        _
      %p1134 = scmp.le.s32.totalorder 2, %s16
      // Predicated region
      $region65: #{segnet_up2_forward.1} parent=5 // pred_check
        %p1135 = pneg %p1134
      $region66: #{segnet_up2_forward.1} parent=5 // pred_check_branch
        %1137 = sbr.rel (%p1135) target = $region68
      $region67: #{segnet_up2_forward.1} parent=5 // pred_region
        %s1138 = ssub.s32 %s16, 2
        // Predicated region
        $region69: #{segnet_up2_forward.1} parent=67 // pred_check
          %p1139 = pneg %p239
        $region70: #{segnet_up2_forward.1} parent=67 // pred_check_branch
          %1141 = sbr.rel (%p1139) target = $region72
        $region71: #{segnet_up2_forward.1} parent=67 // pred_region
          %p1142 = scmp.lt.s32.totalorder %s22, 1
          %s1143 = scalar_select %p1142, %s22, 1
          %s1144 = smul.addr %s1143, 8
          %s1145 = smul.addr %s1144, 8
          %s1146 = scalar_lea.vmem %s9, %s1145
        $region72: #{segnet_up2_forward.1} parent=67 // pred_fallthru
          _
      $region68: #{segnet_up2_forward.1} parent=5 // pred_fallthru
        _
    $region6: #{segnet_up2_forward.1} parent=1 // loop_footer
      %s20 = sadd.s32 1, %s16
    $region7: #{segnet_up2_forward.1} parent=1 // loop_footer_branch
      %15 = sbr.rel target = $region3
    $region8: #{segnet_up2_forward.1} parent=1 // loop_exit
      _
    %1147 = vsyncpa [#allocation3], 1
    %s1148 = scalar_lea.sflag [#allocation3], 1
    %1149 = vsyncpa %s1148, 1

</llo_original>
